<compile_context>
chip_gen: v7x
topology: tpu7x:2x2x1
jax: 0.10.0
libtpu: 0.0.40
codegen_flags: <defaults>
</compile_context>

<pallas_src>
import functools

import numpy as np
import jax
import jax.numpy as jnp
from jax.experimental import pallas as pl
from jax.experimental.pallas import tpu as pltpu


def get_2d_gaussian_kernel(size: int, sigma: float) -> np.ndarray:
    """Peak-normalized 2D Gaussian (center value == 1), float32."""
    c = (size - 1) / 2.0
    xs = np.arange(size, dtype=np.float32) - c
    g1d = np.exp(-(xs ** 2) / (2.0 * sigma ** 2)).astype(np.float32)
    g2d = np.outer(g1d, g1d).astype(np.float32)
    return g2d / g2d.max()


def _abs_colsum_kernel(w_ref, out_ref, *, n_rows):
    # w_ref   : (blk, kk)  native-dtype block of weight rows (VMEM).
    # out_ref : (8, kk)    f32 per-block partial column sums (independent per step).
    blk, kk = w_ref.shape
    x = jnp.abs(w_ref[...].astype(jnp.float32))          # in-kernel upcast (VPU, hidden under DMA)
    if n_rows % blk != 0:                                 # static: ragged tail block only
        row0 = pl.program_id(0) * blk
        rows = jax.lax.broadcasted_iota(jnp.int32, (blk, kk), 0) + row0
        x = jnp.where(rows < n_rows, x, jnp.float32(0.0))
    # Reduce blk rows -> 8 sublanes with pure vreg adds (tile-preserving reshape,
    # no cross-lane XLU reduce in the hot loop).
    out_ref[...] = jnp.sum(x.reshape(blk // 8, 8, kk), axis=0)


def _abs_colsum_pallas(w2d, *, row_block):
    """Per-kernel-position column sums of |w2d| via a row-blocked Pallas grid."""
    n, kk = w2d.shape
    # Sublane-aligned block height, never larger than the array (tail is masked
    # in-kernel, no jnp.pad copy).
    blk = min(int(row_block), max(8, (n // 8) * 8))
    num_blocks = pl.cdiv(n, blk)

    kernel = functools.partial(_abs_colsum_kernel, n_rows=n)
    partials = pl.pallas_call(
        kernel,
        out_shape=jax.ShapeDtypeStruct((num_blocks * 8, kk), jnp.float32),
        grid=(num_blocks,),
        in_specs=[pl.BlockSpec((blk, kk), lambda i: (i, 0))],
        out_specs=pl.BlockSpec((8, kk), lambda i: (i, 0)),
        compiler_params=pltpu.CompilerParams(
            # Independent per-block outputs -> safe to shard across TCs (v7x);
            # harmless no-op on single-TC v5e/v6e.
            dimension_semantics=("parallel",)),
    )(w2d)
    # Tiny epilogue reduction (num_blocks*8 x kk) done by XLA.
    return jnp.sum(partials, axis=0)                      # (kk,) f32


def _masked_abs_sum(weight, mask, *, row_block, min_rows_for_pallas):
    """sum(|mask * weight|) where mask is (K, K) and weight is (..., K, K)."""
    k = int(mask.shape[-1])
    if tuple(mask.shape) != (k, k):
        raise ValueError(f"mask must be square, got {mask.shape}")
    if tuple(weight.shape[-2:]) != (k, k):
        raise ValueError(
            f"weight spatial dims {tuple(weight.shape[-2:])} != mask size {(k, k)}")

    kk = k * k
    w2d = jnp.reshape(weight, (-1, kk))                   # free reshape, native dtype
    n = w2d.shape[0]
    mask_flat = jnp.abs(jnp.reshape(mask, (kk,)).astype(jnp.float32))

    if n < max(int(min_rows_for_pallas), 8):
        # Tiny inputs (the module's typical case): a fused XLA expression beats
        # kernel launch + pipeline overhead on every TPU generation.
        return jnp.sum(jnp.abs(w2d.astype(jnp.float32)) * mask_flat[None, :])

    colsum = _abs_colsum_pallas(w2d, row_block=row_block)  # (kk,)
    return jnp.sum(colsum * mask_flat)


def inverted_gaussian_l1_loss(weight_e, weight_i, mask_e, mask_i, *,
                              row_block: int = 4096,
                              min_rows_for_pallas: int = 1024):
    """sum(|mask_e * weight_e|) + sum(|mask_i * weight_i|), f32 scalar."""
    return (_masked_abs_sum(weight_e, mask_e, row_block=row_block,
                            min_rows_for_pallas=min_rows_for_pallas)
            + _masked_abs_sum(weight_i, mask_i, row_block=row_block,
                              min_rows_for_pallas=min_rows_for_pallas))


class InvertedGaussianL1Loss:
    """JAX/Pallas port of the PyTorch module (buffers built deterministically)."""

    def __init__(self, e_mask_size, i_mask_size, mask_width):
        self.e_mask_size = e_mask_size
        self.i_mask_size = i_mask_size
        self.mask_width = mask_width
        # NOTE: original PyTorch code uses e_mask_size for BOTH buffers; preserved.
        m = 1.0 - get_2d_gaussian_kernel(e_mask_size, mask_width)
        self.mask_e = jnp.asarray(m, dtype=jnp.float32)
        self.mask_i = jnp.asarray(m, dtype=jnp.float32)

    def __call__(self, weight_e, weight_i, *, row_block: int = 4096,
                 min_rows_for_pallas: int = 1024):
        return inverted_gaussian_l1_loss(
            weight_e, weight_i, self.mask_e, self.mask_i,
            row_block=row_block, min_rows_for_pallas=min_rows_for_pallas)


if __name__ == "__main__":
    e_mask_size = 7
    i_mask_size = 7
    mask_width = 3.0

    loss_mod = InvertedGaussianL1Loss(e_mask_size, i_mask_size, mask_width)

    key = jax.random.PRNGKey(0)
    k1, k2, k3, k4 = jax.random.split(key, 4)

    def reference(we, wi):
        return (jnp.sum(jnp.abs(loss_mod.mask_e * we.astype(jnp.float32)))
                + jnp.sum(jnp.abs(loss_mod.mask_i * wi.astype(jnp.float32))))

    # Main case: conv-style weights large enough to take the Pallas path
    # (2048 and 1536 rows of 49 -> single large block each).
    weight_e = jax.random.normal(k1, (64, 32, e_mask_size, e_mask_size), dtype=jnp.float32)
    weight_i = jax.random.normal(k2, (48, 32, e_mask_size, e_mask_size), dtype=jnp.float32)
    loss = jax.block_until_ready(loss_mod(weight_e, weight_i))
    ref = reference(weight_e, weight_i)
    assert jnp.allclose(loss, ref, rtol=1e-5, atol=1e-4), (loss, ref)

    # Multi-block + ragged-tail case (1500 rows, row_block=512 -> 3 blocks with
    # an in-kernel masked tail); second tensor is tiny and takes the jnp fast path.
    we2 = jax.random.normal(k3, (50, 30, e_mask_size, e_mask_size), dtype=jnp.float32)
    wi2 = jax.random.normal(k4, (4, 2, e_mask_size, e_mask_size), dtype=jnp.float32)
    loss2 = jax.block_until_ready(loss_mod(we2, wi2, row_block=512))
    ref2 = reference(we2, wi2)
    assert jnp.allclose(loss2, ref2, rtol=1e-5, atol=1e-4), (loss2, ref2)

    print("KERNEL_OK")
</pallas_src>

<mosaic_0001>
module attributes {stable_mosaic.version = 11 : i64} {
  func.func @_abs_colsum_kernel(%arg0: i32, %arg1: memref<2048x49xf32, #tpu.memory_space<vmem>>, %arg2: memref<8x49xf32, #tpu.memory_space<vmem>>) attributes {dimension_semantics = [#tpu.dimension_semantics<parallel>], iteration_bounds = array<i64: 1>, scalar_prefetch = 0 : i64, scratch_operands = 0 : i64, tpu.core_type = #tpu.core_type<tc>, window_params = [{transform_indices = @transform_0, window_bounds = array<i64: 2048, 49>}, {transform_indices = @transform_1, window_bounds = array<i64: 8, 49>}]} {
    %c0 = arith.constant 0 : index
    %c0_0 = arith.constant 0 : index
    %0 = vector.load %arg1[%c0, %c0_0] : memref<2048x49xf32, #tpu.memory_space<vmem>>, vector<2048x49xf32>
    %1 = math.absf %0 : vector<2048x49xf32>
    %2 = vector.shape_cast %1 : vector<2048x49xf32> to vector<256x8x49xf32>
    %cst = arith.constant dense<0.000000e+00> : vector<8x49xf32>
    %3 = vector.multi_reduction <add>, %2, %cst [0] : vector<256x8x49xf32> to vector<8x49xf32>
    %c0_1 = arith.constant 0 : index
    %c0_2 = arith.constant 0 : index
    %4 = vector.load %arg2[%c0_1, %c0_2] : memref<8x49xf32, #tpu.memory_space<vmem>>, vector<8x49xf32>
    tpu.vector_store %arg2[%c0_1, %c0_2], %3 {strides = array<i32>} : memref<8x49xf32, #tpu.memory_space<vmem>>, vector<8x49xf32>,
    return
  }
  func.func @transform_0(%arg0: i32) -> (i32, i32) {
    %c0_i32 = arith.constant 0 : i32
    %c0_i32_0 = arith.constant 0 : i32
    return %arg0, %c0_i32 : i32, i32
  }
  func.func @transform_1(%arg0: i32) -> (i32, i32) {
    %c0_i32 = arith.constant 0 : i32
    %c0_i32_0 = arith.constant 0 : i32
    return %arg0, %c0_i32 : i32, i32
  }
}

</mosaic_0001>

<llo_original>
// kernel: tpu_custom_call.1
$region0: #{tpu_custom_call.1}
  #allocation0 [shape = 'u32[]', space=smem, size = 0x4, offset = 0x4, fixed_abs, tag = 'smem constant byte address 0x4 - core index']
  #allocation1 [shape = 'u32[144,128]{1,0:T(1,128)}', space=vmem, size = 0x12000, scoped, tag = 'internal scratch']
  %s0 = inlined_call_operand.vmem [shape: f32[2048,49], index: 0, kind: input, shape index: {}]
  %s1 = inlined_call_operand.hbm [shape: f32[8,49], index: 1, kind: output, shape index: {}]
  %s2 = sld [smem:[#allocation0]]
  $region14: #{tpu_custom_call.1} parent=0
    _
  %s4 = ssub.s32 1, %s2
  %s5 = scalar_select 0, %s4, %s2
  $region1: #{tpu_custom_call.1} parent=0
    #allocation2 [shape = 'u8[4096]{0}', space=vmem, size = 0x1000, scoped, tag = 'output window, operand 0, single buffered']
    #allocation3 [shape = 's32[1]{0}', space=sflag, size = 0x4, scoped, tag = 'scoped memory for tpu_custom_call.1']
    %6 = vsyncpa [#allocation3], 0
    // Predicated region
    $region2: #{tpu_custom_call.1} parent=1 // pred_check
      _
    $region3: #{tpu_custom_call.1} parent=1 // pred_check_branch
      %8 = sbr.rel (0) target = $region5
    $region4: #{tpu_custom_call.1} parent=1 // pred_region
      _
    $region5: #{tpu_custom_call.1} parent=1 // pred_fallthru
      _
    %v9 = vld [vmem:[%s0] sm:$0xff]
    %v10 = vld [vmem:[%s0 + $0x8] sm:$0xff]
    %v11 = vld [vmem:[%s0 + $0x10] sm:$0xff]
    %v12 = vld [vmem:[%s0 + $0x18] sm:$0xff]
    %v13 = vld [vmem:[%s0 + $0x20] sm:$0xff]
    %v14 = vld [vmem:[%s0 + $0x28] sm:$0xff]
    %v15 = vld [vmem:[%s0 + $0x30] sm:$0xff]
    %v16 = vld [vmem:[%s0 + $0x38] sm:$0xff]
    %v17 = vld [vmem:[%s0 + $0x40] sm:$0xff]
    %v18 = vld [vmem:[%s0 + $0x48] sm:$0xff]
    %v19 = vld [vmem:[%s0 + $0x50] sm:$0xff]
    %v20 = vld [vmem:[%s0 + $0x58] sm:$0xff]
    %v21 = vld [vmem:[%s0 + $0x60] sm:$0xff]
    %v22 = vld [vmem:[%s0 + $0x68] sm:$0xff]
    %v23 = vld [vmem:[%s0 + $0x70] sm:$0xff]
    %v24 = vld [vmem:[%s0 + $0x78] sm:$0xff]
    %v25 = vld [vmem:[%s0 + $0x80] sm:$0xff]
    %v26 = vld [vmem:[%s0 + $0x88] sm:$0xff]
    %v27 = vld [vmem:[%s0 + $0x90] sm:$0xff]
    %v28 = vld [vmem:[%s0 + $0x98] sm:$0xff]
    %v29 = vld [vmem:[%s0 + $0xa0] sm:$0xff]
    %v30 = vld [vmem:[%s0 + $0xa8] sm:$0xff]
    %v31 = vld [vmem:[%s0 + $0xb0] sm:$0xff]
    %v32 = vld [vmem:[%s0 + $0xb8] sm:$0xff]
    %v33 = vld [vmem:[%s0 + $0xc0] sm:$0xff]
    %v34 = vld [vmem:[%s0 + $0xc8] sm:$0xff]
    %v35 = vld [vmem:[%s0 + $0xd0] sm:$0xff]
    %v36 = vld [vmem:[%s0 + $0xd8] sm:$0xff]
    %v37 = vld [vmem:[%s0 + $0xe0] sm:$0xff]
    %v38 = vld [vmem:[%s0 + $0xe8] sm:$0xff]
    %v39 = vld [vmem:[%s0 + $0xf0] sm:$0xff]
    %v40 = vld [vmem:[%s0 + $0xf8] sm:$0xff]
    %v41 = vld [vmem:[%s0 + $0x100] sm:$0xff]
    %v42 = vld [vmem:[%s0 + $0x108] sm:$0xff]
    %v43 = vld [vmem:[%s0 + $0x110] sm:$0xff]
    %v44 = vld [vmem:[%s0 + $0x118] sm:$0xff]
    %v45 = vld [vmem:[%s0 + $0x120] sm:$0xff]
    %v46 = vld [vmem:[%s0 + $0x128] sm:$0xff]
    %v47 = vld [vmem:[%s0 + $0x130] sm:$0xff]
    %v48 = vld [vmem:[%s0 + $0x138] sm:$0xff]
    %v49 = vld [vmem:[%s0 + $0x140] sm:$0xff]
    %v50 = vld [vmem:[%s0 + $0x148] sm:$0xff]
    %v51 = vld [vmem:[%s0 + $0x150] sm:$0xff]
    %v52 = vld [vmem:[%s0 + $0x158] sm:$0xff]
    %v53 = vld [vmem:[%s0 + $0x160] sm:$0xff]
    %v54 = vld [vmem:[%s0 + $0x168] sm:$0xff]
    %v55 = vld [vmem:[%s0 + $0x170] sm:$0xff]
    %v56 = vld [vmem:[%s0 + $0x178] sm:$0xff]
    %v57 = vld [vmem:[%s0 + $0x180] sm:$0xff]
    %v58 = vld [vmem:[%s0 + $0x188] sm:$0xff]
    %v59 = vld [vmem:[%s0 + $0x190] sm:$0xff]
    %v60 = vld [vmem:[%s0 + $0x198] sm:$0xff]
    %v61 = vld [vmem:[%s0 + $0x1a0] sm:$0xff]
    %v62 = vld [vmem:[%s0 + $0x1a8] sm:$0xff]
    %v63 = vld [vmem:[%s0 + $0x1b0] sm:$0xff]
    %v64 = vld [vmem:[%s0 + $0x1b8] sm:$0xff]
    %v65 = vld [vmem:[%s0 + $0x1c0] sm:$0xff]
    %v66 = vld [vmem:[%s0 + $0x1c8] sm:$0xff]
    %v67 = vld [vmem:[%s0 + $0x1d0] sm:$0xff]
    %v68 = vld [vmem:[%s0 + $0x1d8] sm:$0xff]
    %v69 = vld [vmem:[%s0 + $0x1e0] sm:$0xff]
    %v70 = vld [vmem:[%s0 + $0x1e8] sm:$0xff]
    %v71 = vld [vmem:[%s0 + $0x1f0] sm:$0xff]
    %v72 = vld [vmem:[%s0 + $0x1f8] sm:$0xff]
    %v73 = vld [vmem:[%s0 + $0x200] sm:$0xff]
    %v74 = vld [vmem:[%s0 + $0x208] sm:$0xff]
    %v75 = vld [vmem:[%s0 + $0x210] sm:$0xff]
    %v76 = vld [vmem:[%s0 + $0x218] sm:$0xff]
    %v77 = vld [vmem:[%s0 + $0x220] sm:$0xff]
    %v78 = vld [vmem:[%s0 + $0x228] sm:$0xff]
    %v79 = vld [vmem:[%s0 + $0x230] sm:$0xff]
    %v80 = vld [vmem:[%s0 + $0x238] sm:$0xff]
    %v81 = vld [vmem:[%s0 + $0x240] sm:$0xff]
    %v82 = vld [vmem:[%s0 + $0x248] sm:$0xff]
    %v83 = vld [vmem:[%s0 + $0x250] sm:$0xff]
    %v84 = vld [vmem:[%s0 + $0x258] sm:$0xff]
    %v85 = vld [vmem:[%s0 + $0x260] sm:$0xff]
    %v86 = vld [vmem:[%s0 + $0x268] sm:$0xff]
    %v87 = vld [vmem:[%s0 + $0x270] sm:$0xff]
    %v88 = vld [vmem:[%s0 + $0x278] sm:$0xff]
    %v89 = vld [vmem:[%s0 + $0x280] sm:$0xff]
    %v90 = vld [vmem:[%s0 + $0x288] sm:$0xff]
    %v91 = vld [vmem:[%s0 + $0x290] sm:$0xff]
    %v92 = vld [vmem:[%s0 + $0x298] sm:$0xff]
    %v93 = vld [vmem:[%s0 + $0x2a0] sm:$0xff]
    %v94 = vld [vmem:[%s0 + $0x2a8] sm:$0xff]
    %v95 = vld [vmem:[%s0 + $0x2b0] sm:$0xff]
    %v96 = vld [vmem:[%s0 + $0x2b8] sm:$0xff]
    %v97 = vld [vmem:[%s0 + $0x2c0] sm:$0xff]
    %v98 = vld [vmem:[%s0 + $0x2c8] sm:$0xff]
    %v99 = vld [vmem:[%s0 + $0x2d0] sm:$0xff]
    %v100 = vld [vmem:[%s0 + $0x2d8] sm:$0xff]
    %v101 = vld [vmem:[%s0 + $0x2e0] sm:$0xff]
    %v102 = vld [vmem:[%s0 + $0x2e8] sm:$0xff]
    %v103 = vld [vmem:[%s0 + $0x2f0] sm:$0xff]
    %v104 = vld [vmem:[%s0 + $0x2f8] sm:$0xff]
    %v105 = vld [vmem:[%s0 + $0x300] sm:$0xff]
    %v106 = vld [vmem:[%s0 + $0x308] sm:$0xff]
    %v107 = vld [vmem:[%s0 + $0x310] sm:$0xff]
    %v108 = vld [vmem:[%s0 + $0x318] sm:$0xff]
    %v109 = vld [vmem:[%s0 + $0x320] sm:$0xff]
    %v110 = vld [vmem:[%s0 + $0x328] sm:$0xff]
    %v111 = vld [vmem:[%s0 + $0x330] sm:$0xff]
    %v112 = vld [vmem:[%s0 + $0x338] sm:$0xff]
    %v113 = vld [vmem:[%s0 + $0x340] sm:$0xff]
    %v114 = vld [vmem:[%s0 + $0x348] sm:$0xff]
    %v115 = vld [vmem:[%s0 + $0x350] sm:$0xff]
    %v116 = vld [vmem:[%s0 + $0x358] sm:$0xff]
    %v117 = vld [vmem:[%s0 + $0x360] sm:$0xff]
    %v118 = vld [vmem:[%s0 + $0x368] sm:$0xff]
    %v119 = vld [vmem:[%s0 + $0x370] sm:$0xff]
    %v120 = vld [vmem:[%s0 + $0x378] sm:$0xff]
    %v121 = vld [vmem:[%s0 + $0x380] sm:$0xff]
    %v122 = vld [vmem:[%s0 + $0x388] sm:$0xff]
    %v123 = vld [vmem:[%s0 + $0x390] sm:$0xff]
    %v124 = vld [vmem:[%s0 + $0x398] sm:$0xff]
    %v125 = vld [vmem:[%s0 + $0x3a0] sm:$0xff]
    %v126 = vld [vmem:[%s0 + $0x3a8] sm:$0xff]
    %v127 = vld [vmem:[%s0 + $0x3b0] sm:$0xff]
    %v128 = vld [vmem:[%s0 + $0x3b8] sm:$0xff]
    %v129 = vld [vmem:[%s0 + $0x3c0] sm:$0xff]
    %v130 = vld [vmem:[%s0 + $0x3c8] sm:$0xff]
    %v131 = vld [vmem:[%s0 + $0x3d0] sm:$0xff]
    %v132 = vld [vmem:[%s0 + $0x3d8] sm:$0xff]
    %v133 = vld [vmem:[%s0 + $0x3e0] sm:$0xff]
    %v134 = vld [vmem:[%s0 + $0x3e8] sm:$0xff]
    %v135 = vld [vmem:[%s0 + $0x3f0] sm:$0xff]
    %v136 = vld [vmem:[%s0 + $0x3f8] sm:$0xff]
    %v137 = vld [vmem:[%s0 + $0x400] sm:$0xff]
    %v138 = vld [vmem:[%s0 + $0x408] sm:$0xff]
    %v139 = vld [vmem:[%s0 + $0x410] sm:$0xff]
    %v140 = vld [vmem:[%s0 + $0x418] sm:$0xff]
    %v141 = vld [vmem:[%s0 + $0x420] sm:$0xff]
    %v142 = vld [vmem:[%s0 + $0x428] sm:$0xff]
    %v143 = vld [vmem:[%s0 + $0x430] sm:$0xff]
    %v144 = vld [vmem:[%s0 + $0x438] sm:$0xff]
    %v145 = vld [vmem:[%s0 + $0x440] sm:$0xff]
    %v146 = vld [vmem:[%s0 + $0x448] sm:$0xff]
    %v147 = vld [vmem:[%s0 + $0x450] sm:$0xff]
    %v148 = vld [vmem:[%s0 + $0x458] sm:$0xff]
    %v149 = vld [vmem:[%s0 + $0x460] sm:$0xff]
    %v150 = vld [vmem:[%s0 + $0x468] sm:$0xff]
    %v151 = vld [vmem:[%s0 + $0x470] sm:$0xff]
    %v152 = vld [vmem:[%s0 + $0x478] sm:$0xff]
    %v153 = vld [vmem:[%s0 + $0x480] sm:$0xff]
    %v154 = vld [vmem:[%s0 + $0x488] sm:$0xff]
    %v155 = vld [vmem:[%s0 + $0x490] sm:$0xff]
    %v156 = vld [vmem:[%s0 + $0x498] sm:$0xff]
    %v157 = vld [vmem:[%s0 + $0x4a0] sm:$0xff]
    %v158 = vld [vmem:[%s0 + $0x4a8] sm:$0xff]
    %v159 = vld [vmem:[%s0 + $0x4b0] sm:$0xff]
    %v160 = vld [vmem:[%s0 + $0x4b8] sm:$0xff]
    %v161 = vld [vmem:[%s0 + $0x4c0] sm:$0xff]
    %v162 = vld [vmem:[%s0 + $0x4c8] sm:$0xff]
    %v163 = vld [vmem:[%s0 + $0x4d0] sm:$0xff]
    %v164 = vld [vmem:[%s0 + $0x4d8] sm:$0xff]
    %v165 = vld [vmem:[%s0 + $0x4e0] sm:$0xff]
    %v166 = vld [vmem:[%s0 + $0x4e8] sm:$0xff]
    %v167 = vld [vmem:[%s0 + $0x4f0] sm:$0xff]
    %v168 = vld [vmem:[%s0 + $0x4f8] sm:$0xff]
    %v169 = vld [vmem:[%s0 + $0x500] sm:$0xff]
    %v170 = vld [vmem:[%s0 + $0x508] sm:$0xff]
    %v171 = vld [vmem:[%s0 + $0x510] sm:$0xff]
    %v172 = vld [vmem:[%s0 + $0x518] sm:$0xff]
    %v173 = vld [vmem:[%s0 + $0x520] sm:$0xff]
    %v174 = vld [vmem:[%s0 + $0x528] sm:$0xff]
    %v175 = vld [vmem:[%s0 + $0x530] sm:$0xff]
    %v176 = vld [vmem:[%s0 + $0x538] sm:$0xff]
    %v177 = vld [vmem:[%s0 + $0x540] sm:$0xff]
    %v178 = vld [vmem:[%s0 + $0x548] sm:$0xff]
    %v179 = vld [vmem:[%s0 + $0x550] sm:$0xff]
    %v180 = vld [vmem:[%s0 + $0x558] sm:$0xff]
    %v181 = vld [vmem:[%s0 + $0x560] sm:$0xff]
    %v182 = vld [vmem:[%s0 + $0x568] sm:$0xff]
    %v183 = vld [vmem:[%s0 + $0x570] sm:$0xff]
    %v184 = vld [vmem:[%s0 + $0x578] sm:$0xff]
    %v185 = vld [vmem:[%s0 + $0x580] sm:$0xff]
    %v186 = vld [vmem:[%s0 + $0x588] sm:$0xff]
    %v187 = vld [vmem:[%s0 + $0x590] sm:$0xff]
    %v188 = vld [vmem:[%s0 + $0x598] sm:$0xff]
    %v189 = vld [vmem:[%s0 + $0x5a0] sm:$0xff]
    %v190 = vld [vmem:[%s0 + $0x5a8] sm:$0xff]
    %v191 = vld [vmem:[%s0 + $0x5b0] sm:$0xff]
    %v192 = vld [vmem:[%s0 + $0x5b8] sm:$0xff]
    %v193 = vld [vmem:[%s0 + $0x5c0] sm:$0xff]
    %v194 = vld [vmem:[%s0 + $0x5c8] sm:$0xff]
    %v195 = vld [vmem:[%s0 + $0x5d0] sm:$0xff]
    %v196 = vld [vmem:[%s0 + $0x5d8] sm:$0xff]
    %v197 = vld [vmem:[%s0 + $0x5e0] sm:$0xff]
    %v198 = vld [vmem:[%s0 + $0x5e8] sm:$0xff]
    %v199 = vld [vmem:[%s0 + $0x5f0] sm:$0xff]
    %v200 = vld [vmem:[%s0 + $0x5f8] sm:$0xff]
    %v201 = vld [vmem:[%s0 + $0x600] sm:$0xff]
    %v202 = vld [vmem:[%s0 + $0x608] sm:$0xff]
    %v203 = vld [vmem:[%s0 + $0x610] sm:$0xff]
    %v204 = vld [vmem:[%s0 + $0x618] sm:$0xff]
    %v205 = vld [vmem:[%s0 + $0x620] sm:$0xff]
    %v206 = vld [vmem:[%s0 + $0x628] sm:$0xff]
    %v207 = vld [vmem:[%s0 + $0x630] sm:$0xff]
    %v208 = vld [vmem:[%s0 + $0x638] sm:$0xff]
    %v209 = vld [vmem:[%s0 + $0x640] sm:$0xff]
    %v210 = vld [vmem:[%s0 + $0x648] sm:$0xff]
    %v211 = vld [vmem:[%s0 + $0x650] sm:$0xff]
    %v212 = vld [vmem:[%s0 + $0x658] sm:$0xff]
    %v213 = vld [vmem:[%s0 + $0x660] sm:$0xff]
    %v214 = vld [vmem:[%s0 + $0x668] sm:$0xff]
    %v215 = vld [vmem:[%s0 + $0x670] sm:$0xff]
    %v216 = vld [vmem:[%s0 + $0x678] sm:$0xff]
    %v217 = vld [vmem:[%s0 + $0x680] sm:$0xff]
    %v218 = vld [vmem:[%s0 + $0x688] sm:$0xff]
    %v219 = vld [vmem:[%s0 + $0x690] sm:$0xff]
    %v220 = vld [vmem:[%s0 + $0x698] sm:$0xff]
    %v221 = vld [vmem:[%s0 + $0x6a0] sm:$0xff]
    %v222 = vld [vmem:[%s0 + $0x6a8] sm:$0xff]
    %v223 = vld [vmem:[%s0 + $0x6b0] sm:$0xff]
    %v224 = vld [vmem:[%s0 + $0x6b8] sm:$0xff]
    %v225 = vld [vmem:[%s0 + $0x6c0] sm:$0xff]
    %v226 = vld [vmem:[%s0 + $0x6c8] sm:$0xff]
    %v227 = vld [vmem:[%s0 + $0x6d0] sm:$0xff]
    %v228 = vld [vmem:[%s0 + $0x6d8] sm:$0xff]
    %v229 = vld [vmem:[%s0 + $0x6e0] sm:$0xff]
    %v230 = vld [vmem:[%s0 + $0x6e8] sm:$0xff]
    %v231 = vld [vmem:[%s0 + $0x6f0] sm:$0xff]
    %v232 = vld [vmem:[%s0 + $0x6f8] sm:$0xff]
    %v233 = vld [vmem:[%s0 + $0x700] sm:$0xff]
    %v234 = vld [vmem:[%s0 + $0x708] sm:$0xff]
    %v235 = vld [vmem:[%s0 + $0x710] sm:$0xff]
    %v236 = vld [vmem:[%s0 + $0x718] sm:$0xff]
    %v237 = vld [vmem:[%s0 + $0x720] sm:$0xff]
    %v238 = vld [vmem:[%s0 + $0x728] sm:$0xff]
    %v239 = vld [vmem:[%s0 + $0x730] sm:$0xff]
    %v240 = vld [vmem:[%s0 + $0x738] sm:$0xff]
    %v241 = vld [vmem:[%s0 + $0x740] sm:$0xff]
    %v242 = vld [vmem:[%s0 + $0x748] sm:$0xff]
    %v243 = vld [vmem:[%s0 + $0x750] sm:$0xff]
    %v244 = vld [vmem:[%s0 + $0x758] sm:$0xff]
    %v245 = vld [vmem:[%s0 + $0x760] sm:$0xff]
    %v246 = vld [vmem:[%s0 + $0x768] sm:$0xff]
    %v247 = vld [vmem:[%s0 + $0x770] sm:$0xff]
    %v248 = vld [vmem:[%s0 + $0x778] sm:$0xff]
    %v249 = vld [vmem:[%s0 + $0x780] sm:$0xff]
    %v250 = vld [vmem:[%s0 + $0x788] sm:$0xff]
    %v251 = vld [vmem:[%s0 + $0x790] sm:$0xff]
    %v252 = vld [vmem:[%s0 + $0x798] sm:$0xff]
    %v253 = vld [vmem:[%s0 + $0x7a0] sm:$0xff]
    %v254 = vld [vmem:[%s0 + $0x7a8] sm:$0xff]
    %v255 = vld [vmem:[%s0 + $0x7b0] sm:$0xff]
    %v256 = vld [vmem:[%s0 + $0x7b8] sm:$0xff]
    %v257 = vld [vmem:[%s0 + $0x7c0] sm:$0xff]
    %v258 = vld [vmem:[%s0 + $0x7c8] sm:$0xff]
    %v259 = vld [vmem:[%s0 + $0x7d0] sm:$0xff]
    %v260 = vld [vmem:[%s0 + $0x7d8] sm:$0xff]
    %v261 = vld [vmem:[%s0 + $0x7e0] sm:$0xff]
    %v262 = vld [vmem:[%s0 + $0x7e8] sm:$0xff]
    %v263 = vld [vmem:[%s0 + $0x7f0] sm:$0xff]
    %v264 = vld [vmem:[%s0 + $0x7f8] sm:$0xff]
    %v265 = vand.u32 2147483647, %v9
    %v266 = vand.u32 2147483647, %v10
    %v267 = vand.u32 2147483647, %v11
    %v268 = vand.u32 2147483647, %v12
    %v269 = vand.u32 2147483647, %v13
    %v270 = vand.u32 2147483647, %v14
    %v271 = vand.u32 2147483647, %v15
    %v272 = vand.u32 2147483647, %v16
    %v273 = vand.u32 2147483647, %v17
    %v274 = vand.u32 2147483647, %v18
    %v275 = vand.u32 2147483647, %v19
    %v276 = vand.u32 2147483647, %v20
    %v277 = vand.u32 2147483647, %v21
    %v278 = vand.u32 2147483647, %v22
    %v279 = vand.u32 2147483647, %v23
    %v280 = vand.u32 2147483647, %v24
    %v281 = vand.u32 2147483647, %v25
    %v282 = vand.u32 2147483647, %v26
    %v283 = vand.u32 2147483647, %v27
    %v284 = vand.u32 2147483647, %v28
    %v285 = vand.u32 2147483647, %v29
    %v286 = vand.u32 2147483647, %v30
    %v287 = vand.u32 2147483647, %v31
    %v288 = vand.u32 2147483647, %v32
    %v289 = vand.u32 2147483647, %v33
    %v290 = vand.u32 2147483647, %v34
    %v291 = vand.u32 2147483647, %v35
    %v292 = vand.u32 2147483647, %v36
    %v293 = vand.u32 2147483647, %v37
    %v294 = vand.u32 2147483647, %v38
    %v295 = vand.u32 2147483647, %v39
    %v296 = vand.u32 2147483647, %v40
    %v297 = vand.u32 2147483647, %v41
    %v298 = vand.u32 2147483647, %v42
    %v299 = vand.u32 2147483647, %v43
    %v300 = vand.u32 2147483647, %v44
    %v301 = vand.u32 2147483647, %v45
    %v302 = vand.u32 2147483647, %v46
    %v303 = vand.u32 2147483647, %v47
    %v304 = vand.u32 2147483647, %v48
    %v305 = vand.u32 2147483647, %v49
    %v306 = vand.u32 2147483647, %v50
    %v307 = vand.u32 2147483647, %v51
    %v308 = vand.u32 2147483647, %v52
    %v309 = vand.u32 2147483647, %v53
    %v310 = vand.u32 2147483647, %v54
    %v311 = vand.u32 2147483647, %v55
    %v312 = vand.u32 2147483647, %v56
    %v313 = vand.u32 2147483647, %v57
    %v314 = vand.u32 2147483647, %v58
    %v315 = vand.u32 2147483647, %v59
    %v316 = vand.u32 2147483647, %v60
    %v317 = vand.u32 2147483647, %v61
    %v318 = vand.u32 2147483647, %v62
    %v319 = vand.u32 2147483647, %v63
    %v320 = vand.u32 2147483647, %v64
    %v321 = vand.u32 2147483647, %v65
    %v322 = vand.u32 2147483647, %v66
    %v323 = vand.u32 2147483647, %v67
    %v324 = vand.u32 2147483647, %v68
    %v325 = vand.u32 2147483647, %v69
    %v326 = vand.u32 2147483647, %v70
    %v327 = vand.u32 2147483647, %v71
    %v328 = vand.u32 2147483647, %v72
    %v329 = vand.u32 2147483647, %v73
    %v330 = vand.u32 2147483647, %v74
    %v331 = vand.u32 2147483647, %v75
    %v332 = vand.u32 2147483647, %v76
    %v333 = vand.u32 2147483647, %v77
    %v334 = vand.u32 2147483647, %v78
    %v335 = vand.u32 2147483647, %v79
    %v336 = vand.u32 2147483647, %v80
    %v337 = vand.u32 2147483647, %v81
    %v338 = vand.u32 2147483647, %v82
    %v339 = vand.u32 2147483647, %v83
    %v340 = vand.u32 2147483647, %v84
    %v341 = vand.u32 2147483647, %v85
    %v342 = vand.u32 2147483647, %v86
    %v343 = vand.u32 2147483647, %v87
    %v344 = vand.u32 2147483647, %v88
    %v345 = vand.u32 2147483647, %v89
    %v346 = vand.u32 2147483647, %v90
    %v347 = vand.u32 2147483647, %v91
    %v348 = vand.u32 2147483647, %v92
    %v349 = vand.u32 2147483647, %v93
    %v350 = vand.u32 2147483647, %v94
    %v351 = vand.u32 2147483647, %v95
    %v352 = vand.u32 2147483647, %v96
    %v353 = vand.u32 2147483647, %v97
    %v354 = vand.u32 2147483647, %v98
    %v355 = vand.u32 2147483647, %v99
    %v356 = vand.u32 2147483647, %v100
    %v357 = vand.u32 2147483647, %v101
    %v358 = vand.u32 2147483647, %v102
    %v359 = vand.u32 2147483647, %v103
    %v360 = vand.u32 2147483647, %v104
    %v361 = vand.u32 2147483647, %v105
    %v362 = vand.u32 2147483647, %v106
    %v363 = vand.u32 2147483647, %v107
    %v364 = vand.u32 2147483647, %v108
    %v365 = vand.u32 2147483647, %v109
    %v366 = vand.u32 2147483647, %v110
    %v367 = vand.u32 2147483647, %v111
    %v368 = vand.u32 2147483647, %v112
    %v369 = vand.u32 2147483647, %v113
    %v370 = vand.u32 2147483647, %v114
    %v371 = vand.u32 2147483647, %v115
    %v372 = vand.u32 2147483647, %v116
    %v373 = vand.u32 2147483647, %v117
    %v374 = vand.u32 2147483647, %v118
    %v375 = vand.u32 2147483647, %v119
    %v376 = vand.u32 2147483647, %v120
    %v377 = vand.u32 2147483647, %v121
    %v378 = vand.u32 2147483647, %v122
    %v379 = vand.u32 2147483647, %v123
    %v380 = vand.u32 2147483647, %v124
    %v381 = vand.u32 2147483647, %v125
    %v382 = vand.u32 2147483647, %v126
    %v383 = vand.u32 2147483647, %v127
    %v384 = vand.u32 2147483647, %v128
    %v385 = vand.u32 2147483647, %v129
    %v386 = vand.u32 2147483647, %v130
    %v387 = vand.u32 2147483647, %v131
    %v388 = vand.u32 2147483647, %v132
    %v389 = vand.u32 2147483647, %v133
    %v390 = vand.u32 2147483647, %v134
    %v391 = vand.u32 2147483647, %v135
    %v392 = vand.u32 2147483647, %v136
    %v393 = vand.u32 2147483647, %v137
    %v394 = vand.u32 2147483647, %v138
    %v395 = vand.u32 2147483647, %v139
    %v396 = vand.u32 2147483647, %v140
    %v397 = vand.u32 2147483647, %v141
    %v398 = vand.u32 2147483647, %v142
    %v399 = vand.u32 2147483647, %v143
    %v400 = vand.u32 2147483647, %v144
    %v401 = vand.u32 2147483647, %v145
    %v402 = vand.u32 2147483647, %v146
    %v403 = vand.u32 2147483647, %v147
    %v404 = vand.u32 2147483647, %v148
    %v405 = vand.u32 2147483647, %v149
    %v406 = vand.u32 2147483647, %v150
    %v407 = vand.u32 2147483647, %v151
    %v408 = vand.u32 2147483647, %v152
    %v409 = vand.u32 2147483647, %v153
    %v410 = vand.u32 2147483647, %v154
    %v411 = vand.u32 2147483647, %v155
    %v412 = vand.u32 2147483647, %v156
    %v413 = vand.u32 2147483647, %v157
    %v414 = vand.u32 2147483647, %v158
    %v415 = vand.u32 2147483647, %v159
    %v416 = vand.u32 2147483647, %v160
    %v417 = vand.u32 2147483647, %v161
    %v418 = vand.u32 2147483647, %v162
    %v419 = vand.u32 2147483647, %v163
    %v420 = vand.u32 2147483647, %v164
    %v421 = vand.u32 2147483647, %v165
    %v422 = vand.u32 2147483647, %v166
    %v423 = vand.u32 2147483647, %v167
    %v424 = vand.u32 2147483647, %v168
    %v425 = vand.u32 2147483647, %v169
    %v426 = vand.u32 2147483647, %v170
    %v427 = vand.u32 2147483647, %v171
    %v428 = vand.u32 2147483647, %v172
    %v429 = vand.u32 2147483647, %v173
    %v430 = vand.u32 2147483647, %v174
    %v431 = vand.u32 2147483647, %v175
    %v432 = vand.u32 2147483647, %v176
    %v433 = vand.u32 2147483647, %v177
    %v434 = vand.u32 2147483647, %v178
    %v435 = vand.u32 2147483647, %v179
    %v436 = vand.u32 2147483647, %v180
    %v437 = vand.u32 2147483647, %v181
    %v438 = vand.u32 2147483647, %v182
    %v439 = vand.u32 2147483647, %v183
    %v440 = vand.u32 2147483647, %v184
    %v441 = vand.u32 2147483647, %v185
    %v442 = vand.u32 2147483647, %v186
    %v443 = vand.u32 2147483647, %v187
    %v444 = vand.u32 2147483647, %v188
    %v445 = vand.u32 2147483647, %v189
    %v446 = vand.u32 2147483647, %v190
    %v447 = vand.u32 2147483647, %v191
    %v448 = vand.u32 2147483647, %v192
    %v449 = vand.u32 2147483647, %v193
    %v450 = vand.u32 2147483647, %v194
    %v451 = vand.u32 2147483647, %v195
    %v452 = vand.u32 2147483647, %v196
    %v453 = vand.u32 2147483647, %v197
    %v454 = vand.u32 2147483647, %v198
    %v455 = vand.u32 2147483647, %v199
    %v456 = vand.u32 2147483647, %v200
    %v457 = vand.u32 2147483647, %v201
    %v458 = vand.u32 2147483647, %v202
    %v459 = vand.u32 2147483647, %v203
    %v460 = vand.u32 2147483647, %v204
    %v461 = vand.u32 2147483647, %v205
    %v462 = vand.u32 2147483647, %v206
    %v463 = vand.u32 2147483647, %v207
    %v464 = vand.u32 2147483647, %v208
    %v465 = vand.u32 2147483647, %v209
    %v466 = vand.u32 2147483647, %v210
    %v467 = vand.u32 2147483647, %v211
    %v468 = vand.u32 2147483647, %v212
    %v469 = vand.u32 2147483647, %v213
    %v470 = vand.u32 2147483647, %v214
    %v471 = vand.u32 2147483647, %v215
    %v472 = vand.u32 2147483647, %v216
    %v473 = vand.u32 2147483647, %v217
    %v474 = vand.u32 2147483647, %v218
    %v475 = vand.u32 2147483647, %v219
    %v476 = vand.u32 2147483647, %v220
    %v477 = vand.u32 2147483647, %v221
    %v478 = vand.u32 2147483647, %v222
    %v479 = vand.u32 2147483647, %v223
    %v480 = vand.u32 2147483647, %v224
    %v481 = vand.u32 2147483647, %v225
    %v482 = vand.u32 2147483647, %v226
    %v483 = vand.u32 2147483647, %v227
    %v484 = vand.u32 2147483647, %v228
    %v485 = vand.u32 2147483647, %v229
    %v486 = vand.u32 2147483647, %v230
    %v487 = vand.u32 2147483647, %v231
    %v488 = vand.u32 2147483647, %v232
    %v489 = vand.u32 2147483647, %v233
    %v490 = vand.u32 2147483647, %v234
    %v491 = vand.u32 2147483647, %v235
    %v492 = vand.u32 2147483647, %v236
    %v493 = vand.u32 2147483647, %v237
    %v494 = vand.u32 2147483647, %v238
    %v495 = vand.u32 2147483647, %v239
    %v496 = vand.u32 2147483647, %v240
    %v497 = vand.u32 2147483647, %v241
    %v498 = vand.u32 2147483647, %v242
    %v499 = vand.u32 2147483647, %v243
    %v500 = vand.u32 2147483647, %v244
    %v501 = vand.u32 2147483647, %v245
    %v502 = vand.u32 2147483647, %v246
    %v503 = vand.u32 2147483647, %v247
    %v504 = vand.u32 2147483647, %v248
    %v505 = vand.u32 2147483647, %v249
    %v506 = vand.u32 2147483647, %v250
    %v507 = vand.u32 2147483647, %v251
    %v508 = vand.u32 2147483647, %v252
    %v509 = vand.u32 2147483647, %v253
    %v510 = vand.u32 2147483647, %v254
    %v511 = vand.u32 2147483647, %v255
    %v512 = vand.u32 2147483647, %v256
    %v513 = vand.u32 2147483647, %v257
    %v514 = vand.u32 2147483647, %v258
    %v515 = vand.u32 2147483647, %v259
    %v516 = vand.u32 2147483647, %v260
    %v517 = vand.u32 2147483647, %v261
    %v518 = vand.u32 2147483647, %v262
    %v519 = vand.u32 2147483647, %v263
    %v520 = vand.u32 2147483647, %v264
    %vm521 = vcmask 400384
    %v522 = vsel %vm521, %v265, 0.0
    %v523 = vsel %vm521, %v266, 0.0
    %v524 = vadd.f32 %v522, %v523
    %v525 = vsel %vm521, %v267, 0.0
    %v526 = vadd.f32 %v524, %v525
    %v527 = vsel %vm521, %v268, 0.0
    %v528 = vadd.f32 %v526, %v527
    %v529 = vsel %vm521, %v269, 0.0
    %v530 = vadd.f32 %v528, %v529
    %v531 = vsel %vm521, %v270, 0.0
    %v532 = vadd.f32 %v530, %v531
    %v533 = vsel %vm521, %v271, 0.0
    %v534 = vadd.f32 %v532, %v533
    %v535 = vsel %vm521, %v272, 0.0
    %v536 = vadd.f32 %v534, %v535
    %v537 = vsel %vm521, %v273, 0.0
    %v538 = vadd.f32 %v536, %v537
    %v539 = vsel %vm521, %v274, 0.0
    %v540 = vadd.f32 %v538, %v539
    %v541 = vsel %vm521, %v275, 0.0
    %v542 = vadd.f32 %v540, %v541
    %v543 = vsel %vm521, %v276, 0.0
    %v544 = vadd.f32 %v542, %v543
    %v545 = vsel %vm521, %v277, 0.0
    %v546 = vadd.f32 %v544, %v545
    %v547 = vsel %vm521, %v278, 0.0
    %v548 = vadd.f32 %v546, %v547
    %v549 = vsel %vm521, %v279, 0.0
    %v550 = vadd.f32 %v548, %v549
    %v551 = vsel %vm521, %v280, 0.0
    %v552 = vadd.f32 %v550, %v551
    %v553 = vsel %vm521, %v281, 0.0
    %v554 = vadd.f32 %v552, %v553
    %v555 = vsel %vm521, %v282, 0.0
    %v556 = vadd.f32 %v554, %v555
    %v557 = vsel %vm521, %v283, 0.0
    %v558 = vadd.f32 %v556, %v557
    %v559 = vsel %vm521, %v284, 0.0
    %v560 = vadd.f32 %v558, %v559
    %v561 = vsel %vm521, %v285, 0.0
    %v562 = vadd.f32 %v560, %v561
    %v563 = vsel %vm521, %v286, 0.0
    %v564 = vadd.f32 %v562, %v563
    %v565 = vsel %vm521, %v287, 0.0
    %v566 = vadd.f32 %v564, %v565
    %v567 = vsel %vm521, %v288, 0.0
    %v568 = vadd.f32 %v566, %v567
    %v569 = vsel %vm521, %v289, 0.0
    %v570 = vadd.f32 %v568, %v569
    %v571 = vsel %vm521, %v290, 0.0
    %v572 = vadd.f32 %v570, %v571
    %v573 = vsel %vm521, %v291, 0.0
    %v574 = vadd.f32 %v572, %v573
    %v575 = vsel %vm521, %v292, 0.0
    %v576 = vadd.f32 %v574, %v575
    %v577 = vsel %vm521, %v293, 0.0
    %v578 = vadd.f32 %v576, %v577
    %v579 = vsel %vm521, %v294, 0.0
    %v580 = vadd.f32 %v578, %v579
    %v581 = vsel %vm521, %v295, 0.0
    %v582 = vadd.f32 %v580, %v581
    %v583 = vsel %vm521, %v296, 0.0
    %v584 = vadd.f32 %v582, %v583
    %v585 = vsel %vm521, %v297, 0.0
    %v586 = vadd.f32 %v584, %v585
    %v587 = vsel %vm521, %v298, 0.0
    %v588 = vadd.f32 %v586, %v587
    %v589 = vsel %vm521, %v299, 0.0
    %v590 = vadd.f32 %v588, %v589
    %v591 = vsel %vm521, %v300, 0.0
    %v592 = vadd.f32 %v590, %v591
    %v593 = vsel %vm521, %v301, 0.0
    %v594 = vadd.f32 %v592, %v593
    %v595 = vsel %vm521, %v302, 0.0
    %v596 = vadd.f32 %v594, %v595
    %v597 = vsel %vm521, %v303, 0.0
    %v598 = vadd.f32 %v596, %v597
    %v599 = vsel %vm521, %v304, 0.0
    %v600 = vadd.f32 %v598, %v599
    %v601 = vsel %vm521, %v305, 0.0
    %v602 = vadd.f32 %v600, %v601
    %v603 = vsel %vm521, %v306, 0.0
    %v604 = vadd.f32 %v602, %v603
    %v605 = vsel %vm521, %v307, 0.0
    %v606 = vadd.f32 %v604, %v605
    %v607 = vsel %vm521, %v308, 0.0
    %v608 = vadd.f32 %v606, %v607
    %v609 = vsel %vm521, %v309, 0.0
    %v610 = vadd.f32 %v608, %v609
    %v611 = vsel %vm521, %v310, 0.0
    %v612 = vadd.f32 %v610, %v611
    %v613 = vsel %vm521, %v311, 0.0
    %v614 = vadd.f32 %v612, %v613
    %v615 = vsel %vm521, %v312, 0.0
    %v616 = vadd.f32 %v614, %v615
    %v617 = vsel %vm521, %v313, 0.0
    %v618 = vadd.f32 %v616, %v617
    %v619 = vsel %vm521, %v314, 0.0
    %v620 = vadd.f32 %v618, %v619
    %v621 = vsel %vm521, %v315, 0.0
    %v622 = vadd.f32 %v620, %v621
    %v623 = vsel %vm521, %v316, 0.0
    %v624 = vadd.f32 %v622, %v623
    %v625 = vsel %vm521, %v317, 0.0
    %v626 = vadd.f32 %v624, %v625
    %v627 = vsel %vm521, %v318, 0.0
    %v628 = vadd.f32 %v626, %v627
    %v629 = vsel %vm521, %v319, 0.0
    %v630 = vadd.f32 %v628, %v629
    %v631 = vsel %vm521, %v320, 0.0
    %v632 = vadd.f32 %v630, %v631
    %v633 = vsel %vm521, %v321, 0.0
    %v634 = vadd.f32 %v632, %v633
    %v635 = vsel %vm521, %v322, 0.0
    %v636 = vadd.f32 %v634, %v635
    %v637 = vsel %vm521, %v323, 0.0
    %v638 = vadd.f32 %v636, %v637
    %v639 = vsel %vm521, %v324, 0.0
    %v640 = vadd.f32 %v638, %v639
    %v641 = vsel %vm521, %v325, 0.0
    %v642 = vadd.f32 %v640, %v641
    %v643 = vsel %vm521, %v326, 0.0
    %v644 = vadd.f32 %v642, %v643
    %v645 = vsel %vm521, %v327, 0.0
    %v646 = vadd.f32 %v644, %v645
    %v647 = vsel %vm521, %v328, 0.0
    %v648 = vadd.f32 %v646, %v647
    %v649 = vsel %vm521, %v329, 0.0
    %v650 = vadd.f32 %v648, %v649
    %v651 = vsel %vm521, %v330, 0.0
    %v652 = vadd.f32 %v650, %v651
    %v653 = vsel %vm521, %v331, 0.0
    %v654 = vadd.f32 %v652, %v653
    %v655 = vsel %vm521, %v332, 0.0
    %v656 = vadd.f32 %v654, %v655
    %v657 = vsel %vm521, %v333, 0.0
    %v658 = vadd.f32 %v656, %v657
    %v659 = vsel %vm521, %v334, 0.0
    %v660 = vadd.f32 %v658, %v659
    %v661 = vsel %vm521, %v335, 0.0
    %v662 = vadd.f32 %v660, %v661
    %v663 = vsel %vm521, %v336, 0.0
    %v664 = vadd.f32 %v662, %v663
    %v665 = vsel %vm521, %v337, 0.0
    %v666 = vadd.f32 %v664, %v665
    %v667 = vsel %vm521, %v338, 0.0
    %v668 = vadd.f32 %v666, %v667
    %v669 = vsel %vm521, %v339, 0.0
    %v670 = vadd.f32 %v668, %v669
    %v671 = vsel %vm521, %v340, 0.0
    %v672 = vadd.f32 %v670, %v671
    %v673 = vsel %vm521, %v341, 0.0
    %v674 = vadd.f32 %v672, %v673
    %v675 = vsel %vm521, %v342, 0.0
    %v676 = vadd.f32 %v674, %v675
    %v677 = vsel %vm521, %v343, 0.0
    %v678 = vadd.f32 %v676, %v677
    %v679 = vsel %vm521, %v344, 0.0
    %v680 = vadd.f32 %v678, %v679
    %v681 = vsel %vm521, %v345, 0.0
    %v682 = vadd.f32 %v680, %v681
    %v683 = vsel %vm521, %v346, 0.0
    %v684 = vadd.f32 %v682, %v683
    %v685 = vsel %vm521, %v347, 0.0
    %v686 = vadd.f32 %v684, %v685
    %v687 = vsel %vm521, %v348, 0.0
    %v688 = vadd.f32 %v686, %v687
    %v689 = vsel %vm521, %v349, 0.0
    %v690 = vadd.f32 %v688, %v689
    %v691 = vsel %vm521, %v350, 0.0
    %v692 = vadd.f32 %v690, %v691
    %v693 = vsel %vm521, %v351, 0.0
    %v694 = vadd.f32 %v692, %v693
    %v695 = vsel %vm521, %v352, 0.0
    %v696 = vadd.f32 %v694, %v695
    %v697 = vsel %vm521, %v353, 0.0
    %v698 = vadd.f32 %v696, %v697
    %v699 = vsel %vm521, %v354, 0.0
    %v700 = vadd.f32 %v698, %v699
    %v701 = vsel %vm521, %v355, 0.0
    %v702 = vadd.f32 %v700, %v701
    %v703 = vsel %vm521, %v356, 0.0
    %v704 = vadd.f32 %v702, %v703
    %v705 = vsel %vm521, %v357, 0.0
    %v706 = vadd.f32 %v704, %v705
    %v707 = vsel %vm521, %v358, 0.0
    %v708 = vadd.f32 %v706, %v707
    %v709 = vsel %vm521, %v359, 0.0
    %v710 = vadd.f32 %v708, %v709
    %v711 = vsel %vm521, %v360, 0.0
    %v712 = vadd.f32 %v710, %v711
    %v713 = vsel %vm521, %v361, 0.0
    %v714 = vadd.f32 %v712, %v713
    %v715 = vsel %vm521, %v362, 0.0
    %v716 = vadd.f32 %v714, %v715
    %v717 = vsel %vm521, %v363, 0.0
    %v718 = vadd.f32 %v716, %v717
    %v719 = vsel %vm521, %v364, 0.0
    %v720 = vadd.f32 %v718, %v719
    %v721 = vsel %vm521, %v365, 0.0
    %v722 = vadd.f32 %v720, %v721
    %v723 = vsel %vm521, %v366, 0.0
    %v724 = vadd.f32 %v722, %v723
    %v725 = vsel %vm521, %v367, 0.0
    %v726 = vadd.f32 %v724, %v725
    %v727 = vsel %vm521, %v368, 0.0
    %v728 = vadd.f32 %v726, %v727
    %v729 = vsel %vm521, %v369, 0.0
    %v730 = vadd.f32 %v728, %v729
    %v731 = vsel %vm521, %v370, 0.0
    %v732 = vadd.f32 %v730, %v731
    %v733 = vsel %vm521, %v371, 0.0
    %v734 = vadd.f32 %v732, %v733
    %v735 = vsel %vm521, %v372, 0.0
    %v736 = vadd.f32 %v734, %v735
    %v737 = vsel %vm521, %v373, 0.0
    %v738 = vadd.f32 %v736, %v737
    %v739 = vsel %vm521, %v374, 0.0
    %v740 = vadd.f32 %v738, %v739
    %v741 = vsel %vm521, %v375, 0.0
    %v742 = vadd.f32 %v740, %v741
    %v743 = vsel %vm521, %v376, 0.0
    %v744 = vadd.f32 %v742, %v743
    %v745 = vsel %vm521, %v377, 0.0
    %v746 = vadd.f32 %v744, %v745
    %v747 = vsel %vm521, %v378, 0.0
    %v748 = vadd.f32 %v746, %v747
    %v749 = vsel %vm521, %v379, 0.0
    %v750 = vadd.f32 %v748, %v749
    %v751 = vsel %vm521, %v380, 0.0
    %v752 = vadd.f32 %v750, %v751
    %v753 = vsel %vm521, %v381, 0.0
    %v754 = vadd.f32 %v752, %v753
    %v755 = vsel %vm521, %v382, 0.0
    %v756 = vadd.f32 %v754, %v755
    %v757 = vsel %vm521, %v383, 0.0
    %v758 = vadd.f32 %v756, %v757
    %v759 = vsel %vm521, %v384, 0.0
    %v760 = vadd.f32 %v758, %v759
    %v761 = vsel %vm521, %v385, 0.0
    %v762 = vadd.f32 %v760, %v761
    %v763 = vsel %vm521, %v386, 0.0
    %v764 = vadd.f32 %v762, %v763
    %v765 = vsel %vm521, %v387, 0.0
    %v766 = vadd.f32 %v764, %v765
    %v767 = vsel %vm521, %v388, 0.0
    %v768 = vadd.f32 %v766, %v767
    %v769 = vsel %vm521, %v389, 0.0
    %v770 = vadd.f32 %v768, %v769
    %v771 = vsel %vm521, %v390, 0.0
    %v772 = vadd.f32 %v770, %v771
    %v773 = vsel %vm521, %v391, 0.0
    %v774 = vadd.f32 %v772, %v773
    %v775 = vsel %vm521, %v392, 0.0
    %v776 = vadd.f32 %v774, %v775
    %v777 = vsel %vm521, %v393, 0.0
    %v778 = vadd.f32 %v776, %v777
    %v779 = vsel %vm521, %v394, 0.0
    %v780 = vadd.f32 %v778, %v779
    %v781 = vsel %vm521, %v395, 0.0
    %v782 = vadd.f32 %v780, %v781
    %v783 = vsel %vm521, %v396, 0.0
    %v784 = vadd.f32 %v782, %v783
    %v785 = vsel %vm521, %v397, 0.0
    %v786 = vadd.f32 %v784, %v785
    %v787 = vsel %vm521, %v398, 0.0
    %v788 = vadd.f32 %v786, %v787
    %v789 = vsel %vm521, %v399, 0.0
    %v790 = vadd.f32 %v788, %v789
    %v791 = vsel %vm521, %v400, 0.0
    %v792 = vadd.f32 %v790, %v791
    %v793 = vsel %vm521, %v401, 0.0
    %v794 = vadd.f32 %v792, %v793
    %v795 = vsel %vm521, %v402, 0.0
    %v796 = vadd.f32 %v794, %v795
    %v797 = vsel %vm521, %v403, 0.0
    %v798 = vadd.f32 %v796, %v797
    %v799 = vsel %vm521, %v404, 0.0
    %v800 = vadd.f32 %v798, %v799
    %v801 = vsel %vm521, %v405, 0.0
    %v802 = vadd.f32 %v800, %v801
    %v803 = vsel %vm521, %v406, 0.0
    %v804 = vadd.f32 %v802, %v803
    %v805 = vsel %vm521, %v407, 0.0
    %v806 = vadd.f32 %v804, %v805
    %v807 = vsel %vm521, %v408, 0.0
    %v808 = vadd.f32 %v806, %v807
    %v809 = vsel %vm521, %v409, 0.0
    %v810 = vadd.f32 %v808, %v809
    %v811 = vsel %vm521, %v410, 0.0
    %v812 = vadd.f32 %v810, %v811
    %v813 = vsel %vm521, %v411, 0.0
    %v814 = vadd.f32 %v812, %v813
    %v815 = vsel %vm521, %v412, 0.0
    %v816 = vadd.f32 %v814, %v815
    %v817 = vsel %vm521, %v413, 0.0
    %v818 = vadd.f32 %v816, %v817
    %v819 = vsel %vm521, %v414, 0.0
    %v820 = vadd.f32 %v818, %v819
    %v821 = vsel %vm521, %v415, 0.0
    %v822 = vadd.f32 %v820, %v821
    %v823 = vsel %vm521, %v416, 0.0
    %v824 = vadd.f32 %v822, %v823
    %v825 = vsel %vm521, %v417, 0.0
    %v826 = vadd.f32 %v824, %v825
    %v827 = vsel %vm521, %v418, 0.0
    %v828 = vadd.f32 %v826, %v827
    %v829 = vsel %vm521, %v419, 0.0
    %v830 = vadd.f32 %v828, %v829
    %v831 = vsel %vm521, %v420, 0.0
    %v832 = vadd.f32 %v830, %v831
    %v833 = vsel %vm521, %v421, 0.0
    %v834 = vadd.f32 %v832, %v833
    %v835 = vsel %vm521, %v422, 0.0
    %v836 = vadd.f32 %v834, %v835
    %v837 = vsel %vm521, %v423, 0.0
    %v838 = vadd.f32 %v836, %v837
    %v839 = vsel %vm521, %v424, 0.0
    %v840 = vadd.f32 %v838, %v839
    %v841 = vsel %vm521, %v425, 0.0
    %v842 = vadd.f32 %v840, %v841
    %v843 = vsel %vm521, %v426, 0.0
    %v844 = vadd.f32 %v842, %v843
    %v845 = vsel %vm521, %v427, 0.0
    %v846 = vadd.f32 %v844, %v845
    %v847 = vsel %vm521, %v428, 0.0
    %v848 = vadd.f32 %v846, %v847
    %v849 = vsel %vm521, %v429, 0.0
    %v850 = vadd.f32 %v848, %v849
    %v851 = vsel %vm521, %v430, 0.0
    %v852 = vadd.f32 %v850, %v851
    %v853 = vsel %vm521, %v431, 0.0
    %v854 = vadd.f32 %v852, %v853
    %v855 = vsel %vm521, %v432, 0.0
    %v856 = vadd.f32 %v854, %v855
    %v857 = vsel %vm521, %v433, 0.0
    %v858 = vadd.f32 %v856, %v857
    %v859 = vsel %vm521, %v434, 0.0
    %v860 = vadd.f32 %v858, %v859
    %v861 = vsel %vm521, %v435, 0.0
    %v862 = vadd.f32 %v860, %v861
    %v863 = vsel %vm521, %v436, 0.0
    %v864 = vadd.f32 %v862, %v863
    %v865 = vsel %vm521, %v437, 0.0
    %v866 = vadd.f32 %v864, %v865
    %v867 = vsel %vm521, %v438, 0.0
    %v868 = vadd.f32 %v866, %v867
    %v869 = vsel %vm521, %v439, 0.0
    %v870 = vadd.f32 %v868, %v869
    %v871 = vsel %vm521, %v440, 0.0
    %v872 = vadd.f32 %v870, %v871
    %v873 = vsel %vm521, %v441, 0.0
    %v874 = vadd.f32 %v872, %v873
    %v875 = vsel %vm521, %v442, 0.0
    %v876 = vadd.f32 %v874, %v875
    %v877 = vsel %vm521, %v443, 0.0
    %v878 = vadd.f32 %v876, %v877
    %v879 = vsel %vm521, %v444, 0.0
    %v880 = vadd.f32 %v878, %v879
    %v881 = vsel %vm521, %v445, 0.0
    %v882 = vadd.f32 %v880, %v881
    %v883 = vsel %vm521, %v446, 0.0
    %v884 = vadd.f32 %v882, %v883
    %v885 = vsel %vm521, %v447, 0.0
    %v886 = vadd.f32 %v884, %v885
    %v887 = vsel %vm521, %v448, 0.0
    %v888 = vadd.f32 %v886, %v887
    %v889 = vsel %vm521, %v449, 0.0
    %v890 = vadd.f32 %v888, %v889
    %v891 = vsel %vm521, %v450, 0.0
    %v892 = vadd.f32 %v890, %v891
    %v893 = vsel %vm521, %v451, 0.0
    %v894 = vadd.f32 %v892, %v893
    %v895 = vsel %vm521, %v452, 0.0
    %v896 = vadd.f32 %v894, %v895
    %v897 = vsel %vm521, %v453, 0.0
    %v898 = vadd.f32 %v896, %v897
    %v899 = vsel %vm521, %v454, 0.0
    %v900 = vadd.f32 %v898, %v899
    %v901 = vsel %vm521, %v455, 0.0
    %v902 = vadd.f32 %v900, %v901
    %v903 = vsel %vm521, %v456, 0.0
    %v904 = vadd.f32 %v902, %v903
    %v905 = vsel %vm521, %v457, 0.0
    %v906 = vadd.f32 %v904, %v905
    %v907 = vsel %vm521, %v458, 0.0
    %v908 = vadd.f32 %v906, %v907
    %v909 = vsel %vm521, %v459, 0.0
    %v910 = vadd.f32 %v908, %v909
    %v911 = vsel %vm521, %v460, 0.0
    %v912 = vadd.f32 %v910, %v911
    %v913 = vsel %vm521, %v461, 0.0
    %v914 = vadd.f32 %v912, %v913
    %v915 = vsel %vm521, %v462, 0.0
    %v916 = vadd.f32 %v914, %v915
    %v917 = vsel %vm521, %v463, 0.0
    %v918 = vadd.f32 %v916, %v917
    %v919 = vsel %vm521, %v464, 0.0
    %v920 = vadd.f32 %v918, %v919
    %v921 = vsel %vm521, %v465, 0.0
    %v922 = vadd.f32 %v920, %v921
    %v923 = vsel %vm521, %v466, 0.0
    %v924 = vadd.f32 %v922, %v923
    %v925 = vsel %vm521, %v467, 0.0
    %v926 = vadd.f32 %v924, %v925
    %v927 = vsel %vm521, %v468, 0.0
    %v928 = vadd.f32 %v926, %v927
    %v929 = vsel %vm521, %v469, 0.0
    %v930 = vadd.f32 %v928, %v929
    %v931 = vsel %vm521, %v470, 0.0
    %v932 = vadd.f32 %v930, %v931
    %v933 = vsel %vm521, %v471, 0.0
    %v934 = vadd.f32 %v932, %v933
    %v935 = vsel %vm521, %v472, 0.0
    %v936 = vadd.f32 %v934, %v935
    %v937 = vsel %vm521, %v473, 0.0
    %v938 = vadd.f32 %v936, %v937
    %v939 = vsel %vm521, %v474, 0.0
    %v940 = vadd.f32 %v938, %v939
    %v941 = vsel %vm521, %v475, 0.0
    %v942 = vadd.f32 %v940, %v941
    %v943 = vsel %vm521, %v476, 0.0
    %v944 = vadd.f32 %v942, %v943
    %v945 = vsel %vm521, %v477, 0.0
    %v946 = vadd.f32 %v944, %v945
    %v947 = vsel %vm521, %v478, 0.0
    %v948 = vadd.f32 %v946, %v947
    %v949 = vsel %vm521, %v479, 0.0
    %v950 = vadd.f32 %v948, %v949
    %v951 = vsel %vm521, %v480, 0.0
    %v952 = vadd.f32 %v950, %v951
    %v953 = vsel %vm521, %v481, 0.0
    %v954 = vadd.f32 %v952, %v953
    %v955 = vsel %vm521, %v482, 0.0
    %v956 = vadd.f32 %v954, %v955
    %v957 = vsel %vm521, %v483, 0.0
    %v958 = vadd.f32 %v956, %v957
    %v959 = vsel %vm521, %v484, 0.0
    %v960 = vadd.f32 %v958, %v959
    %v961 = vsel %vm521, %v485, 0.0
    %v962 = vadd.f32 %v960, %v961
    %v963 = vsel %vm521, %v486, 0.0
    %v964 = vadd.f32 %v962, %v963
    %v965 = vsel %vm521, %v487, 0.0
    %v966 = vadd.f32 %v964, %v965
    %v967 = vsel %vm521, %v488, 0.0
    %v968 = vadd.f32 %v966, %v967
    %v969 = vsel %vm521, %v489, 0.0
    %v970 = vadd.f32 %v968, %v969
    %v971 = vsel %vm521, %v490, 0.0
    %v972 = vadd.f32 %v970, %v971
    %v973 = vsel %vm521, %v491, 0.0
    %v974 = vadd.f32 %v972, %v973
    %v975 = vsel %vm521, %v492, 0.0
    %v976 = vadd.f32 %v974, %v975
    %v977 = vsel %vm521, %v493, 0.0
    %v978 = vadd.f32 %v976, %v977
    %v979 = vsel %vm521, %v494, 0.0
    %v980 = vadd.f32 %v978, %v979
    %v981 = vsel %vm521, %v495, 0.0
    %v982 = vadd.f32 %v980, %v981
    %v983 = vsel %vm521, %v496, 0.0
    %v984 = vadd.f32 %v982, %v983
    %v985 = vsel %vm521, %v497, 0.0
    %v986 = vadd.f32 %v984, %v985
    %v987 = vsel %vm521, %v498, 0.0
    %v988 = vadd.f32 %v986, %v987
    %v989 = vsel %vm521, %v499, 0.0
    %v990 = vadd.f32 %v988, %v989
    %v991 = vsel %vm521, %v500, 0.0
    %v992 = vadd.f32 %v990, %v991
    %v993 = vsel %vm521, %v501, 0.0
    %v994 = vadd.f32 %v992, %v993
    %v995 = vsel %vm521, %v502, 0.0
    %v996 = vadd.f32 %v994, %v995
    %v997 = vsel %vm521, %v503, 0.0
    %v998 = vadd.f32 %v996, %v997
    %v999 = vsel %vm521, %v504, 0.0
    %v1000 = vadd.f32 %v998, %v999
    %v1001 = vsel %vm521, %v505, 0.0
    %v1002 = vadd.f32 %v1000, %v1001
    %v1003 = vsel %vm521, %v506, 0.0
    %v1004 = vadd.f32 %v1002, %v1003
    %v1005 = vsel %vm521, %v507, 0.0
    %v1006 = vadd.f32 %v1004, %v1005
    %v1007 = vsel %vm521, %v508, 0.0
    %v1008 = vadd.f32 %v1006, %v1007
    %v1009 = vsel %vm521, %v509, 0.0
    %v1010 = vadd.f32 %v1008, %v1009
    %v1011 = vsel %vm521, %v510, 0.0
    %v1012 = vadd.f32 %v1010, %v1011
    %v1013 = vsel %vm521, %v511, 0.0
    %v1014 = vadd.f32 %v1012, %v1013
    %v1015 = vsel %vm521, %v512, 0.0
    %v1016 = vadd.f32 %v1014, %v1015
    %v1017 = vsel %vm521, %v513, 0.0
    %v1018 = vadd.f32 %v1016, %v1017
    %v1019 = vsel %vm521, %v514, 0.0
    %v1020 = vadd.f32 %v1018, %v1019
    %v1021 = vsel %vm521, %v515, 0.0
    %v1022 = vadd.f32 %v1020, %v1021
    %v1023 = vsel %vm521, %v516, 0.0
    %v1024 = vadd.f32 %v1022, %v1023
    %v1025 = vsel %vm521, %v517, 0.0
    %v1026 = vadd.f32 %v1024, %v1025
    %v1027 = vsel %vm521, %v518, 0.0
    %v1028 = vadd.f32 %v1026, %v1027
    %v1029 = vsel %vm521, %v519, 0.0
    %v1030 = vadd.f32 %v1028, %v1029
    %v1031 = vsel %vm521, %v520, 0.0
    %v1032 = vadd.f32 %v1030, %v1031
    %1033 = vst.msk [vmem:[#allocation2] sm:$0xff] %vm521, %v1032
    // Predicated region
    $region6: #{tpu_custom_call.1} parent=1 // pred_check
      _
    $region7: #{tpu_custom_call.1} parent=1 // pred_check_branch
      %1035 = sbr.rel (0) target = $region9
    $region8: #{tpu_custom_call.1} parent=1 // pred_region
      %s1037 = ssub.s32 128, 128
      %1038 = vsyncadd [#allocation3], %s1037
      %s1040 = sshll.u32 [#allocation2], 4
      %s1041 = int_to_ptr.vmem [resolvable:$true] %s1040
      %1043 = dma.vmem_to_hbm [thread:$0]  %s1041, 128, %s1, [#allocation3]
    $region9: #{tpu_custom_call.1} parent=1 // pred_fallthru
      _
    // Predicated region
    $region10: #{tpu_custom_call.1} parent=1 // pred_check
      _
    $region11: #{tpu_custom_call.1} parent=1 // pred_check_branch
      %1045 = sbr.rel (0) target = $region13
    $region12: #{tpu_custom_call.1} parent=1 // pred_region
      %1046 = dma.done [#allocation3], 128
    $region13: #{tpu_custom_call.1} parent=1 // pred_fallthru
      _
    %1047 = vsyncpa [#allocation3], 1

</llo_original>
